<compile_context>
chip_gen: v7x
topology: tpu7x:2x2x1
jax: 0.10.0
libtpu: 0.0.40
codegen_flags: <defaults>
</compile_context>

<pallas_src>
import numpy as np
import jax
import jax.numpy as jnp
from jax.experimental import pallas as pl
from jax.experimental.pallas import tpu as pltpu

EPS = float(np.finfo(np.float32).eps)
LOG_2PI = float(np.log(2.0 * np.pi))


def gaussian_head_kernel(feat_ref, aw_ref, bw_ref, bias_ref, out_ref):
    # feat_ref: (TB, S, C)  bf16 feature tile, NHWC-flattened (C lane-dense, S on sublanes)
    # aw_ref:   (C, Kp)     (-0.5/S^2) * inv_var.T          -- weights for (sum_s f)^2
    # bw_ref:   (C, Kp)     (1/S) * (mu * inv_var).T        -- weights for  sum_s f
    # bias_ref: (1, Kp)     z_log - 0.5 * sum_c mu^2*inv_var
    # out_ref:  (TB, Kp)    per-class log-likelihoods (lane-padded classes)
    feat = feat_ref[...].astype(jnp.float32)           # bf16 stream -> f32 accumulate

    # AvgPool2d + flatten: spatial SUM only (the 1/S and 1/S^2 scales are folded
    # into aw/bw by the wrapper).  Sublane reduction over S, lanes stay dense.
    s = jnp.sum(feat, axis=1)                           # (TB, C)

    # Fused Mahalanobis + normalizer: two MXU pushes into one f32 accumulator.
    out = jnp.dot(s * s, aw_ref[...], preferred_element_type=jnp.float32)   # (TB, Kp)
    out += jnp.dot(s, bw_ref[...], preferred_element_type=jnp.float32)
    out_ref[...] = (out + bias_ref[...]).astype(out_ref.dtype)


def resnet_gaussian_forward(feat, centers, covs, *, data_format="NHWC",
                            batch_tile=512, feat_dtype=jnp.bfloat16):
    """Forward after the ResNet trunk: AvgPool2d(4) + flatten + GaussianLayer.

    `feat` is the penultimate feature map, NHWC (TPU-native) by default.
    """
    if data_format == "NCHW":
        # One XLA transpose pass; on TPU the trunk can emit NHWC for free instead.
        feat = jnp.transpose(feat, (0, 2, 3, 1))
    B, H, W, C = feat.shape
    # AvgPool2d(4) + view(B,-1) into a 512-dim GaussianLayer only matches a 4x4 map.
    assert (H, W) == (4, 4), "expected a 4x4 penultimate feature map (CIFAR-style ResNet)"
    K = centers.shape[0]
    S = H * W

    # ---- parameter-only precompute (tiny; no per-invocation transcendentals in-kernel)
    centers = centers.astype(jnp.float32)
    covs = covs.astype(jnp.float32)
    var = jnp.exp(covs) + EPS                                             # (K, C)
    inv_var = 1.0 / var                                                   # (K, C)
    z_log = -0.5 * jnp.sum(jnp.log(var), axis=-1) - 0.5 * C * LOG_2PI     # (K,)
    aw = ((-0.5 / float(S * S)) * inv_var).T                              # (C, K)
    bw = ((1.0 / float(S)) * (centers * inv_var)).T                       # (C, K)
    bias = z_log - 0.5 * jnp.sum(centers * centers * inv_var, axis=-1)    # (K,)

    # Zero-pad classes to a lane-dense output width (unmasked stores, clean MXU pops).
    Kp = 128 * pl.cdiv(K, 128)
    aw_p = jnp.zeros((C, Kp), jnp.float32).at[:, :K].set(aw)
    bw_p = jnp.zeros((C, Kp), jnp.float32).at[:, :K].set(bw)
    bias_p = jnp.zeros((1, Kp), jnp.float32).at[0, :K].set(bias)

    # NHWC -> (B, S, C): free contiguous reshape; stream in bf16 (f32 accum in-kernel).
    feat_flat = feat.reshape(B, S, C).astype(feat_dtype)

    # Batch tiling: full batch in one block when small; otherwise an 8-aligned tile
    # so the 2-D output block keeps sublane alignment (partial last block is fine).
    if B <= batch_tile:
        tb = B
    else:
        tb = max(8, (batch_tile // 8) * 8)
    grid = (pl.cdiv(B, tb),)

    out = pl.pallas_call(
        gaussian_head_kernel,
        out_shape=jax.ShapeDtypeStruct((B, Kp), jnp.float32),
        grid=grid,
        in_specs=[
            pl.BlockSpec((tb, S, C), lambda b: (b, 0, 0)),   # batch-tiled features
            pl.BlockSpec((C, Kp), lambda b: (0, 0)),         # grid-invariant weights (x^2)
            pl.BlockSpec((C, Kp), lambda b: (0, 0)),         # grid-invariant weights (x)
            pl.BlockSpec((1, Kp), lambda b: (0, 0)),         # grid-invariant bias
        ],
        out_specs=pl.BlockSpec((tb, Kp), lambda b: (b, 0)),
        compiler_params=pltpu.CompilerParams(
            dimension_semantics=("parallel",),
            vmem_limit_bytes=48 * 1024 * 1024),
    )(feat_flat, aw_p, bw_p, bias_p)

    return out[:, :K]


def _reference(feat_nhwc, centers, covs):
    """Pure-JAX reference mirroring the PyTorch module semantics (f32)."""
    B, H, W, C = feat_nhwc.shape
    x = jnp.mean(feat_nhwc.astype(jnp.float32), axis=(1, 2))   # AvgPool2d(4) + flatten
    var = jnp.exp(covs.astype(jnp.float32)) + EPS
    z_log = -0.5 * jnp.sum(jnp.log(var), axis=-1) - 0.5 * C * LOG_2PI
    diff = x[:, None, :] - centers.astype(jnp.float32)[None, :, :]
    exp_log = -0.5 * jnp.sum(diff * diff / var[None, :, :], axis=-1)
    return z_log[None, :] + exp_log


if __name__ == "__main__":
    # Shapes implied by the module: penultimate ResNet feature map (B, 4, 4, 512)
    # (NHWC, standing in for self.net(x)), GaussianLayer(input_dim=512, n_classes=10).
    B, H, W, C = 4, 4, 4, 512
    K = 10

    key = jax.random.PRNGKey(0)
    k_feat, k_cen, k_cov = jax.random.split(key, 3)

    # Deterministic synthetic parameters matching GaussianLayer.__init__:
    #   centers = 0.5 * randn(K, C); covs = 0.2 + Exponential(scale=0.5)
    centers = 0.5 * jax.random.normal(k_cen, (K, C), dtype=jnp.float32)
    covs = 0.2 + 0.5 * jax.random.exponential(k_cov, (K, C), dtype=jnp.float32)

    # Synthetic penultimate feature map (NHWC, the TPU-native trunk output layout).
    feat = jax.random.normal(k_feat, (B, H, W, C), dtype=jnp.float32)

    out = jax.jit(resnet_gaussian_forward)(feat, centers, covs)
    out = jax.block_until_ready(out)

    ref = _reference(feat, centers, covs)
    assert out.shape == (B, K), out.shape
    # Tolerance accounts for the deliberate bf16 feature stream (f32 accumulation).
    np.testing.assert_allclose(np.asarray(out), np.asarray(ref), rtol=2e-3, atol=0.25)

    print("KERNEL_OK")
</pallas_src>

<mosaic_0001>
module attributes {stable_mosaic.version = 11 : i64} {
  func.func @gaussian_head_kernel(%arg0: i32, %arg1: memref<4x16x512xbf16, #tpu.memory_space<vmem>>, %arg2: memref<512x128xf32, #tpu.memory_space<vmem>>, %arg3: memref<512x128xf32, #tpu.memory_space<vmem>>, %arg4: memref<1x128xf32, #tpu.memory_space<vmem>>, %arg5: memref<4x128xf32, #tpu.memory_space<vmem>>) attributes {dimension_semantics = [#tpu.dimension_semantics<parallel>], iteration_bounds = array<i64: 1>, scalar_prefetch = 0 : i64, scratch_operands = 0 : i64, tpu.core_type = #tpu.core_type<tc>, window_params = [{transform_indices = @transform_0, window_bounds = array<i64: 4, 16, 512>}, {pipeline_mode = #tpu.pipeline_mode<synchronous>, transform_indices = @transform_1, window_bounds = array<i64: 512, 128>}, {pipeline_mode = #tpu.pipeline_mode<synchronous>, transform_indices = @transform_2, window_bounds = array<i64: 512, 128>}, {pipeline_mode = #tpu.pipeline_mode<synchronous>, transform_indices = @transform_3, window_bounds = array<i64: 1, 128>}, {transform_indices = @transform_4, window_bounds = array<i64: 4, 128>}]} {
    %c0 = arith.constant 0 : index
    %c0_0 = arith.constant 0 : index
    %c0_1 = arith.constant 0 : index
    %0 = vector.load %arg1[%c0, %c0_0, %c0_1] : memref<4x16x512xbf16, #tpu.memory_space<vmem>>, vector<4x16x512xbf16>
    %1 = arith.extf %0 : vector<4x16x512xbf16> to vector<4x16x512xf32>
    %cst = arith.constant dense<0.000000e+00> : vector<4x512xf32>
    %2 = vector.multi_reduction <add>, %1, %cst [1] : vector<4x16x512xf32> to vector<4x512xf32>
    %3 = arith.mulf %2, %2 : vector<4x512xf32>
    %c0_2 = arith.constant 0 : index
    %c0_3 = arith.constant 0 : index
    %4 = vector.load %arg2[%c0_2, %c0_3] : memref<512x128xf32, #tpu.memory_space<vmem>>, vector<512x128xf32>
    %cst_4 = arith.constant dense<0.000000e+00> : vector<4x128xf32>
    %5 = tpu.matmul %3, %4, %cst_4 {dimension_numbers = #tpu.dot_dimension_numbers<[1], [0], [0], [1], [0, 0, 1, 1], [], []>} : vector<4x512xf32>, vector<512x128xf32>, vector<4x128xf32> -> vector<4x128xf32>
    %c0_5 = arith.constant 0 : index
    %c0_6 = arith.constant 0 : index
    %6 = vector.load %arg3[%c0_5, %c0_6] : memref<512x128xf32, #tpu.memory_space<vmem>>, vector<512x128xf32>
    %cst_7 = arith.constant dense<0.000000e+00> : vector<4x128xf32>
    %7 = tpu.matmul %2, %6, %cst_7 {dimension_numbers = #tpu.dot_dimension_numbers<[1], [0], [0], [1], [0, 0, 1, 1], [], []>} : vector<4x512xf32>, vector<512x128xf32>, vector<4x128xf32> -> vector<4x128xf32>
    %8 = arith.addf %5, %7 : vector<4x128xf32>
    %c0_8 = arith.constant 0 : index
    %c0_9 = arith.constant 0 : index
    %9 = vector.load %arg4[%c0_8, %c0_9] : memref<1x128xf32, #tpu.memory_space<vmem>>, vector<1x128xf32>
    %10 = vector.broadcast %9 : vector<1x128xf32> to vector<4x128xf32>
    %11 = arith.addf %8, %10 : vector<4x128xf32>
    %c0_10 = arith.constant 0 : index
    %c0_11 = arith.constant 0 : index
    %12 = vector.load %arg5[%c0_10, %c0_11] : memref<4x128xf32, #tpu.memory_space<vmem>>, vector<4x128xf32>
    tpu.vector_store %arg5[%c0_10, %c0_11], %11 {strides = array<i32>} : memref<4x128xf32, #tpu.memory_space<vmem>>, vector<4x128xf32>,
    return
  }
  func.func @transform_0(%arg0: i32) -> (i32, i32, i32) {
    %c0_i32 = arith.constant 0 : i32
    %c0_i32_0 = arith.constant 0 : i32
    %c0_i32_1 = arith.constant 0 : i32
    return %arg0, %c0_i32, %c0_i32_0 : i32, i32, i32
  }
  func.func @transform_1(%arg0: i32) -> (i32, i32) {
    %c0_i32 = arith.constant 0 : i32
    %c0_i32_0 = arith.constant 0 : i32
    %c0_i32_1 = arith.constant 0 : i32
    return %c0_i32, %c0_i32_0 : i32, i32
  }
  func.func @transform_2(%arg0: i32) -> (i32, i32) {
    %c0_i32 = arith.constant 0 : i32
    %c0_i32_0 = arith.constant 0 : i32
    %c0_i32_1 = arith.constant 0 : i32
    return %c0_i32, %c0_i32_0 : i32, i32
  }
  func.func @transform_3(%arg0: i32) -> (i32, i32) {
    %c0_i32 = arith.constant 0 : i32
    %c0_i32_0 = arith.constant 0 : i32
    %c0_i32_1 = arith.constant 0 : i32
    return %c0_i32, %c0_i32_0 : i32, i32
  }
  func.func @transform_4(%arg0: i32) -> (i32, i32) {
    %c0_i32 = arith.constant 0 : i32
    %c0_i32_0 = arith.constant 0 : i32
    return %arg0, %c0_i32 : i32, i32
  }
}

</mosaic_0001>

<llo_original>
// kernel: resnet_gaussian_forward.1
$region0: #{resnet_gaussian_forward.1}
  #allocation0 [shape = 'u32[]', space=smem, size = 0x4, offset = 0x4, fixed_abs, tag = 'smem constant byte address 0x4 - core index']
  #allocation1 [shape = 'u32[144,128]{1,0:T(1,128)}', space=vmem, size = 0x12000, scoped, tag = 'internal scratch']
  %s0 = inlined_call_operand.vmem [shape: bf16[4,16,512], index: 0, kind: input, shape index: {}]
  %s1 = inlined_call_operand.vmem [shape: f32[512,128], index: 1, kind: input, shape index: {}]
  %s2 = inlined_call_operand.vmem [shape: f32[512,128], index: 2, kind: input, shape index: {}]
  %s3 = inlined_call_operand.vmem [shape: f32[1,128], index: 3, kind: input, shape index: {}]
  %s4 = inlined_call_operand.hbm [shape: f32[4,128], index: 4, kind: output, shape index: {}]
  %s5 = sld [smem:[#allocation0]]
  $region26: #{resnet_gaussian_forward.1} parent=0
    _
  %s7 = ssub.s32 1, %s5
  %s8 = scalar_select 0, %s7, %s5
  $region1: #{resnet_gaussian_forward.1} parent=0
    #allocation2 [shape = 'u8[2048]{0}', space=vmem, size = 0x800, scoped, tag = 'output window, operand 0, single buffered']
    #allocation3 [shape = 's32[1]{0}', space=sflag, size = 0x4, scoped, tag = 'scoped memory for resnet_gaussian_forward.1']
    %9 = vsyncpa [#allocation3], 0
    // Predicated region
    $region2: #{resnet_gaussian_forward.1} parent=1 // pred_check
      _
    $region3: #{resnet_gaussian_forward.1} parent=1 // pred_check_branch
      %11 = sbr.rel (0) target = $region5
    $region4: #{resnet_gaussian_forward.1} parent=1 // pred_region
      _
    $region5: #{resnet_gaussian_forward.1} parent=1 // pred_fallthru
      _
    // Predicated region
    $region6: #{resnet_gaussian_forward.1} parent=1 // pred_check
      _
    $region7: #{resnet_gaussian_forward.1} parent=1 // pred_check_branch
      %13 = sbr.rel (0) target = $region9
    $region8: #{resnet_gaussian_forward.1} parent=1 // pred_region
      _
    $region9: #{resnet_gaussian_forward.1} parent=1 // pred_fallthru
      _
    // Predicated region
    $region10: #{resnet_gaussian_forward.1} parent=1 // pred_check
      _
    $region11: #{resnet_gaussian_forward.1} parent=1 // pred_check_branch
      %15 = sbr.rel (0) target = $region13
    $region12: #{resnet_gaussian_forward.1} parent=1 // pred_region
      _
    $region13: #{resnet_gaussian_forward.1} parent=1 // pred_fallthru
      _
    // Predicated region
    $region14: #{resnet_gaussian_forward.1} parent=1 // pred_check
      _
    $region15: #{resnet_gaussian_forward.1} parent=1 // pred_check_branch
      %17 = sbr.rel (0) target = $region17
    $region16: #{resnet_gaussian_forward.1} parent=1 // pred_region
      _
    $region17: #{resnet_gaussian_forward.1} parent=1 // pred_fallthru
      _
    %v18 = vld [vmem:[%s0] sm:$0xff]
    %v19 = vld [vmem:[%s0 + $0x8] sm:$0xff]
    %v20 = vld [vmem:[%s0 + $0x10] sm:$0xff]
    %v21 = vld [vmem:[%s0 + $0x18] sm:$0xff]
    %v22 = vld [vmem:[%s0 + $0x20] sm:$0xff]
    %v23 = vld [vmem:[%s0 + $0x28] sm:$0xff]
    %v24 = vld [vmem:[%s0 + $0x30] sm:$0xff]
    %v25 = vld [vmem:[%s0 + $0x38] sm:$0xff]
    %v26 = vld [vmem:[%s0 + $0x40] sm:$0xff]
    %v27 = vld [vmem:[%s0 + $0x48] sm:$0xff]
    %v28 = vld [vmem:[%s0 + $0x50] sm:$0xff]
    %v29 = vld [vmem:[%s0 + $0x58] sm:$0xff]
    %v30 = vld [vmem:[%s0 + $0x60] sm:$0xff]
    %v31 = vld [vmem:[%s0 + $0x68] sm:$0xff]
    %v32 = vld [vmem:[%s0 + $0x70] sm:$0xff]
    %v33 = vld [vmem:[%s0 + $0x78] sm:$0xff]
    %v34 = vunpack.c.l.bf16 %v18
    %v35 = vunpack.c.h.bf16 %v18
    %v36 = vunpack.c.l.bf16 %v19
    %v37 = vunpack.c.h.bf16 %v19
    %v38 = vunpack.c.l.bf16 %v20
    %v39 = vunpack.c.h.bf16 %v20
    %v40 = vunpack.c.l.bf16 %v21
    %v41 = vunpack.c.h.bf16 %v21
    %v42 = vunpack.c.l.bf16 %v22
    %v43 = vunpack.c.h.bf16 %v22
    %v44 = vunpack.c.l.bf16 %v23
    %v45 = vunpack.c.h.bf16 %v23
    %v46 = vunpack.c.l.bf16 %v24
    %v47 = vunpack.c.h.bf16 %v24
    %v48 = vunpack.c.l.bf16 %v25
    %v49 = vunpack.c.h.bf16 %v25
    %v50 = vunpack.c.l.bf16 %v26
    %v51 = vunpack.c.h.bf16 %v26
    %v52 = vunpack.c.l.bf16 %v27
    %v53 = vunpack.c.h.bf16 %v27
    %v54 = vunpack.c.l.bf16 %v28
    %v55 = vunpack.c.h.bf16 %v28
    %v56 = vunpack.c.l.bf16 %v29
    %v57 = vunpack.c.h.bf16 %v29
    %v58 = vunpack.c.l.bf16 %v30
    %v59 = vunpack.c.h.bf16 %v30
    %v60 = vunpack.c.l.bf16 %v31
    %v61 = vunpack.c.h.bf16 %v31
    %v62 = vunpack.c.l.bf16 %v32
    %v63 = vunpack.c.h.bf16 %v32
    %v64 = vunpack.c.l.bf16 %v33
    %v65 = vunpack.c.h.bf16 %v33
    %v66 = vadd.f32 %v34, %v38
    %v67 = vrot.slane %v66, 4
    %v68 = vadd.f32 %v66, %v67
    %v69 = vrot.slane %v68, 2
    %v70 = vadd.f32 %v68, %v69
    %v71 = vrot.slane %v70, 1
    %v72 = vadd.f32 %v70, %v71
    %v73 = vadd.f32 %v35, %v39
    %v74 = vrot.slane %v73, 4
    %v75 = vadd.f32 %v73, %v74
    %v76 = vrot.slane %v75, 2
    %v77 = vadd.f32 %v75, %v76
    %v78 = vrot.slane %v77, 1
    %v79 = vadd.f32 %v77, %v78
    %v80 = vadd.f32 %v36, %v40
    %v81 = vrot.slane %v80, 4
    %v82 = vadd.f32 %v80, %v81
    %v83 = vrot.slane %v82, 2
    %v84 = vadd.f32 %v82, %v83
    %v85 = vrot.slane %v84, 1
    %v86 = vadd.f32 %v84, %v85
    %v87 = vadd.f32 %v37, %v41
    %v88 = vrot.slane %v87, 4
    %v89 = vadd.f32 %v87, %v88
    %v90 = vrot.slane %v89, 2
    %v91 = vadd.f32 %v89, %v90
    %v92 = vrot.slane %v91, 1
    %v93 = vadd.f32 %v91, %v92
    %v94 = vadd.f32 %v42, %v46
    %v95 = vrot.slane %v94, 4
    %v96 = vadd.f32 %v94, %v95
    %v97 = vrot.slane %v96, 2
    %v98 = vadd.f32 %v96, %v97
    %v99 = vrot.slane %v98, 1
    %v100 = vadd.f32 %v98, %v99
    %v101 = vadd.f32 %v43, %v47
    %v102 = vrot.slane %v101, 4
    %v103 = vadd.f32 %v101, %v102
    %v104 = vrot.slane %v103, 2
    %v105 = vadd.f32 %v103, %v104
    %v106 = vrot.slane %v105, 1
    %v107 = vadd.f32 %v105, %v106
    %v108 = vadd.f32 %v44, %v48
    %v109 = vrot.slane %v108, 4
    %v110 = vadd.f32 %v108, %v109
    %v111 = vrot.slane %v110, 2
    %v112 = vadd.f32 %v110, %v111
    %v113 = vrot.slane %v112, 1
    %v114 = vadd.f32 %v112, %v113
    %v115 = vadd.f32 %v45, %v49
    %v116 = vrot.slane %v115, 4
    %v117 = vadd.f32 %v115, %v116
    %v118 = vrot.slane %v117, 2
    %v119 = vadd.f32 %v117, %v118
    %v120 = vrot.slane %v119, 1
    %v121 = vadd.f32 %v119, %v120
    %v122 = vadd.f32 %v50, %v54
    %v123 = vrot.slane %v122, 4
    %v124 = vadd.f32 %v122, %v123
    %v125 = vrot.slane %v124, 2
    %v126 = vadd.f32 %v124, %v125
    %v127 = vrot.slane %v126, 1
    %v128 = vadd.f32 %v126, %v127
    %v129 = vadd.f32 %v51, %v55
    %v130 = vrot.slane %v129, 4
    %v131 = vadd.f32 %v129, %v130
    %v132 = vrot.slane %v131, 2
    %v133 = vadd.f32 %v131, %v132
    %v134 = vrot.slane %v133, 1
    %v135 = vadd.f32 %v133, %v134
    %v136 = vadd.f32 %v52, %v56
    %v137 = vrot.slane %v136, 4
    %v138 = vadd.f32 %v136, %v137
    %v139 = vrot.slane %v138, 2
    %v140 = vadd.f32 %v138, %v139
    %v141 = vrot.slane %v140, 1
    %v142 = vadd.f32 %v140, %v141
    %v143 = vadd.f32 %v53, %v57
    %v144 = vrot.slane %v143, 4
    %v145 = vadd.f32 %v143, %v144
    %v146 = vrot.slane %v145, 2
    %v147 = vadd.f32 %v145, %v146
    %v148 = vrot.slane %v147, 1
    %v149 = vadd.f32 %v147, %v148
    %v150 = vadd.f32 %v58, %v62
    %v151 = vrot.slane %v150, 4
    %v152 = vadd.f32 %v150, %v151
    %v153 = vrot.slane %v152, 2
    %v154 = vadd.f32 %v152, %v153
    %v155 = vrot.slane %v154, 1
    %v156 = vadd.f32 %v154, %v155
    %v157 = vadd.f32 %v59, %v63
    %v158 = vrot.slane %v157, 4
    %v159 = vadd.f32 %v157, %v158
    %v160 = vrot.slane %v159, 2
    %v161 = vadd.f32 %v159, %v160
    %v162 = vrot.slane %v161, 1
    %v163 = vadd.f32 %v161, %v162
    %v164 = vadd.f32 %v60, %v64
    %v165 = vrot.slane %v164, 4
    %v166 = vadd.f32 %v164, %v165
    %v167 = vrot.slane %v166, 2
    %v168 = vadd.f32 %v166, %v167
    %v169 = vrot.slane %v168, 1
    %v170 = vadd.f32 %v168, %v169
    %v171 = vadd.f32 %v61, %v65
    %v172 = vrot.slane %v171, 4
    %v173 = vadd.f32 %v171, %v172
    %v174 = vrot.slane %v173, 2
    %v175 = vadd.f32 %v173, %v174
    %v176 = vrot.slane %v175, 1
    %v177 = vadd.f32 %v175, %v176
    %v178 = vmul.f32 %v72, %v72
    %v179 = vmul.f32 %v79, %v79
    %v180 = vmul.f32 %v86, %v86
    %v181 = vmul.f32 %v93, %v93
    %v182 = vmul.f32 %v100, %v100
    %v183 = vmul.f32 %v107, %v107
    %v184 = vmul.f32 %v114, %v114
    %v185 = vmul.f32 %v121, %v121
    %v186 = vmul.f32 %v128, %v128
    %v187 = vmul.f32 %v135, %v135
    %v188 = vmul.f32 %v142, %v142
    %v189 = vmul.f32 %v149, %v149
    %v190 = vmul.f32 %v156, %v156
    %v191 = vmul.f32 %v163, %v163
    %v192 = vmul.f32 %v170, %v170
    %v193 = vmul.f32 %v177, %v177
    %v194 = vld [vmem:[%s1] sm:$0xff]
    %v195 = vld [vmem:[%s1 + $0x8] sm:$0xff]
    %v196 = vld [vmem:[%s1 + $0x10] sm:$0xff]
    %v197 = vld [vmem:[%s1 + $0x18] sm:$0xff]
    %v198 = vld [vmem:[%s1 + $0x20] sm:$0xff]
    %v199 = vld [vmem:[%s1 + $0x28] sm:$0xff]
    %v200 = vld [vmem:[%s1 + $0x30] sm:$0xff]
    %v201 = vld [vmem:[%s1 + $0x38] sm:$0xff]
    %v202 = vld [vmem:[%s1 + $0x40] sm:$0xff]
    %v203 = vld [vmem:[%s1 + $0x48] sm:$0xff]
    %v204 = vld [vmem:[%s1 + $0x50] sm:$0xff]
    %v205 = vld [vmem:[%s1 + $0x58] sm:$0xff]
    %v206 = vld [vmem:[%s1 + $0x60] sm:$0xff]
    %v207 = vld [vmem:[%s1 + $0x68] sm:$0xff]
    %v208 = vld [vmem:[%s1 + $0x70] sm:$0xff]
    %v209 = vld [vmem:[%s1 + $0x78] sm:$0xff]
    %v210 = vld [vmem:[%s1 + $0x80] sm:$0xff]
    %v211 = vld [vmem:[%s1 + $0x88] sm:$0xff]
    %v212 = vld [vmem:[%s1 + $0x90] sm:$0xff]
    %v213 = vld [vmem:[%s1 + $0x98] sm:$0xff]
    %v214 = vld [vmem:[%s1 + $0xa0] sm:$0xff]
    %v215 = vld [vmem:[%s1 + $0xa8] sm:$0xff]
    %v216 = vld [vmem:[%s1 + $0xb0] sm:$0xff]
    %v217 = vld [vmem:[%s1 + $0xb8] sm:$0xff]
    %v218 = vld [vmem:[%s1 + $0xc0] sm:$0xff]
    %v219 = vld [vmem:[%s1 + $0xc8] sm:$0xff]
    %v220 = vld [vmem:[%s1 + $0xd0] sm:$0xff]
    %v221 = vld [vmem:[%s1 + $0xd8] sm:$0xff]
    %v222 = vld [vmem:[%s1 + $0xe0] sm:$0xff]
    %v223 = vld [vmem:[%s1 + $0xe8] sm:$0xff]
    %v224 = vld [vmem:[%s1 + $0xf0] sm:$0xff]
    %v225 = vld [vmem:[%s1 + $0xf8] sm:$0xff]
    %v226 = vld [vmem:[%s1 + $0x100] sm:$0xff]
    %v227 = vld [vmem:[%s1 + $0x108] sm:$0xff]
    %v228 = vld [vmem:[%s1 + $0x110] sm:$0xff]
    %v229 = vld [vmem:[%s1 + $0x118] sm:$0xff]
    %v230 = vld [vmem:[%s1 + $0x120] sm:$0xff]
    %v231 = vld [vmem:[%s1 + $0x128] sm:$0xff]
    %v232 = vld [vmem:[%s1 + $0x130] sm:$0xff]
    %v233 = vld [vmem:[%s1 + $0x138] sm:$0xff]
    %v234 = vld [vmem:[%s1 + $0x140] sm:$0xff]
    %v235 = vld [vmem:[%s1 + $0x148] sm:$0xff]
    %v236 = vld [vmem:[%s1 + $0x150] sm:$0xff]
    %v237 = vld [vmem:[%s1 + $0x158] sm:$0xff]
    %v238 = vld [vmem:[%s1 + $0x160] sm:$0xff]
    %v239 = vld [vmem:[%s1 + $0x168] sm:$0xff]
    %v240 = vld [vmem:[%s1 + $0x170] sm:$0xff]
    %v241 = vld [vmem:[%s1 + $0x178] sm:$0xff]
    %v242 = vld [vmem:[%s1 + $0x180] sm:$0xff]
    %v243 = vld [vmem:[%s1 + $0x188] sm:$0xff]
    %v244 = vld [vmem:[%s1 + $0x190] sm:$0xff]
    %v245 = vld [vmem:[%s1 + $0x198] sm:$0xff]
    %v246 = vld [vmem:[%s1 + $0x1a0] sm:$0xff]
    %v247 = vld [vmem:[%s1 + $0x1a8] sm:$0xff]
    %v248 = vld [vmem:[%s1 + $0x1b0] sm:$0xff]
    %v249 = vld [vmem:[%s1 + $0x1b8] sm:$0xff]
    %v250 = vld [vmem:[%s1 + $0x1c0] sm:$0xff]
    %v251 = vld [vmem:[%s1 + $0x1c8] sm:$0xff]
    %v252 = vld [vmem:[%s1 + $0x1d0] sm:$0xff]
    %v253 = vld [vmem:[%s1 + $0x1d8] sm:$0xff]
    %v254 = vld [vmem:[%s1 + $0x1e0] sm:$0xff]
    %v255 = vld [vmem:[%s1 + $0x1e8] sm:$0xff]
    %v256 = vld [vmem:[%s1 + $0x1f0] sm:$0xff]
    %v257 = vld [vmem:[%s1 + $0x1f8] sm:$0xff]
    %v258 = vld [vmem:[%s2] sm:$0xff]
    %v259 = vld [vmem:[%s2 + $0x8] sm:$0xff]
    %v260 = vld [vmem:[%s2 + $0x10] sm:$0xff]
    %v261 = vld [vmem:[%s2 + $0x18] sm:$0xff]
    %v262 = vld [vmem:[%s2 + $0x20] sm:$0xff]
    %v263 = vld [vmem:[%s2 + $0x28] sm:$0xff]
    %v264 = vld [vmem:[%s2 + $0x30] sm:$0xff]
    %v265 = vld [vmem:[%s2 + $0x38] sm:$0xff]
    %v266 = vld [vmem:[%s2 + $0x40] sm:$0xff]
    %v267 = vld [vmem:[%s2 + $0x48] sm:$0xff]
    %v268 = vld [vmem:[%s2 + $0x50] sm:$0xff]
    %v269 = vld [vmem:[%s2 + $0x58] sm:$0xff]
    %v270 = vld [vmem:[%s2 + $0x60] sm:$0xff]
    %v271 = vld [vmem:[%s2 + $0x68] sm:$0xff]
    %v272 = vld [vmem:[%s2 + $0x70] sm:$0xff]
    %v273 = vld [vmem:[%s2 + $0x78] sm:$0xff]
    %v274 = vld [vmem:[%s2 + $0x80] sm:$0xff]
    %v275 = vld [vmem:[%s2 + $0x88] sm:$0xff]
    %v276 = vld [vmem:[%s2 + $0x90] sm:$0xff]
    %v277 = vld [vmem:[%s2 + $0x98] sm:$0xff]
    %v278 = vld [vmem:[%s2 + $0xa0] sm:$0xff]
    %v279 = vld [vmem:[%s2 + $0xa8] sm:$0xff]
    %v280 = vld [vmem:[%s2 + $0xb0] sm:$0xff]
    %v281 = vld [vmem:[%s2 + $0xb8] sm:$0xff]
    %v282 = vld [vmem:[%s2 + $0xc0] sm:$0xff]
    %v283 = vld [vmem:[%s2 + $0xc8] sm:$0xff]
    %v284 = vld [vmem:[%s2 + $0xd0] sm:$0xff]
    %v285 = vld [vmem:[%s2 + $0xd8] sm:$0xff]
    %v286 = vld [vmem:[%s2 + $0xe0] sm:$0xff]
    %v287 = vld [vmem:[%s2 + $0xe8] sm:$0xff]
    %v288 = vld [vmem:[%s2 + $0xf0] sm:$0xff]
    %v289 = vld [vmem:[%s2 + $0xf8] sm:$0xff]
    %v290 = vld [vmem:[%s2 + $0x100] sm:$0xff]
    %v291 = vld [vmem:[%s2 + $0x108] sm:$0xff]
    %v292 = vld [vmem:[%s2 + $0x110] sm:$0xff]
    %v293 = vld [vmem:[%s2 + $0x118] sm:$0xff]
    %v294 = vld [vmem:[%s2 + $0x120] sm:$0xff]
    %v295 = vld [vmem:[%s2 + $0x128] sm:$0xff]
    %v296 = vld [vmem:[%s2 + $0x130] sm:$0xff]
    %v297 = vld [vmem:[%s2 + $0x138] sm:$0xff]
    %v298 = vld [vmem:[%s2 + $0x140] sm:$0xff]
    %v299 = vld [vmem:[%s2 + $0x148] sm:$0xff]
    %v300 = vld [vmem:[%s2 + $0x150] sm:$0xff]
    %v301 = vld [vmem:[%s2 + $0x158] sm:$0xff]
    %v302 = vld [vmem:[%s2 + $0x160] sm:$0xff]
    %v303 = vld [vmem:[%s2 + $0x168] sm:$0xff]
    %v304 = vld [vmem:[%s2 + $0x170] sm:$0xff]
    %v305 = vld [vmem:[%s2 + $0x178] sm:$0xff]
    %v306 = vld [vmem:[%s2 + $0x180] sm:$0xff]
    %v307 = vld [vmem:[%s2 + $0x188] sm:$0xff]
    %v308 = vld [vmem:[%s2 + $0x190] sm:$0xff]
    %v309 = vld [vmem:[%s2 + $0x198] sm:$0xff]
    %v310 = vld [vmem:[%s2 + $0x1a0] sm:$0xff]
    %v311 = vld [vmem:[%s2 + $0x1a8] sm:$0xff]
    %v312 = vld [vmem:[%s2 + $0x1b0] sm:$0xff]
    %v313 = vld [vmem:[%s2 + $0x1b8] sm:$0xff]
    %v314 = vld [vmem:[%s2 + $0x1c0] sm:$0xff]
    %v315 = vld [vmem:[%s2 + $0x1c8] sm:$0xff]
    %v316 = vld [vmem:[%s2 + $0x1d0] sm:$0xff]
    %v317 = vld [vmem:[%s2 + $0x1d8] sm:$0xff]
    %v318 = vld [vmem:[%s2 + $0x1e0] sm:$0xff]
    %v319 = vld [vmem:[%s2 + $0x1e8] sm:$0xff]
    %v320 = vld [vmem:[%s2 + $0x1f0] sm:$0xff]
    %v321 = vld [vmem:[%s2 + $0x1f8] sm:$0xff]
    %vm338 = vcmask 1041409
    %v339 = vsel %vm338, %v100, %v72
    %vm340 = vcmask 1042434
    %v341 = vsel %vm340, %v128, %v339
    %vm342 = vcmask 1043459
    %v343 = vsel %vm342, %v156, %v341
    %v344 = vsel %vm338, %v107, %v79
    %v345 = vsel %vm340, %v135, %v344
    %v346 = vsel %vm342, %v163, %v345
    %v347 = vsel %vm338, %v114, %v86
    %v348 = vsel %vm340, %v142, %v347
    %v349 = vsel %vm342, %v170, %v348
    %v350 = vsel %vm338, %v121, %v93
    %v351 = vsel %vm340, %v149, %v350
    %v352 = vsel %vm342, %v177, %v351
    %357 = vmatprep.subr.mxu0 0.0
    %358 = vmatpush1.msra.mxu0 %v258
    %359 = vmatprep.subr.mxu0 0.0
    %360 = vmatpush1.msra.mxu0 %v259
    %361 = vmatprep.subr.mxu0 0.0
    %362 = vmatpush1.msra.mxu0 %v260
    %363 = vmatprep.subr.mxu0 0.0
    %364 = vmatpush1.msra.mxu0 %v261
    %365 = vmatprep.subr.mxu0 0.0
    %366 = vmatpush1.msra.mxu0 %v262
    %367 = vmatprep.subr.mxu0 0.0
    %368 = vmatpush1.msra.mxu0 %v263
    %369 = vmatprep.subr.mxu0 0.0
    %370 = vmatpush1.msra.mxu0 %v264
    %371 = vmatprep.subr.mxu0 0.0
    %372 = vmatpush1.msra.mxu0 %v265
    %373 = vmatprep.subr.mxu0 0.0
    %374 = vmatpush1.msra.mxu0 %v266
    %375 = vmatprep.subr.mxu0 0.0
    %376 = vmatpush1.msra.mxu0 %v267
    %377 = vmatprep.subr.mxu0 0.0
    %378 = vmatpush1.msra.mxu0 %v268
    %379 = vmatprep.subr.mxu0 0.0
    %380 = vmatpush1.msra.mxu0 %v269
    %381 = vmatprep.subr.mxu0 0.0
    %382 = vmatpush1.msra.mxu0 %v270
    %383 = vmatprep.subr.mxu0 0.0
    %384 = vmatpush1.msra.mxu0 %v271
    %385 = vmatprep.subr.mxu0 0.0
    %386 = vmatpush1.msra.mxu0 %v272
    %387 = vmatprep.subr.mxu0 0.0
    %388 = vmatpush1.msra.mxu0 %v273
    %389 = vmatprep.subr.mxu0 0.0
    %390 = vmatpush1.msra.mxu0 %v274
    %391 = vmatprep.subr.mxu0 0.0
    %392 = vmatpush1.msra.mxu0 %v275
    %393 = vmatprep.subr.mxu0 0.0
    %394 = vmatpush1.msra.mxu0 %v276
    %395 = vmatprep.subr.mxu0 0.0
    %396 = vmatpush1.msra.mxu0 %v277
    %397 = vmatprep.subr.mxu0 0.0
    %398 = vmatpush1.msra.mxu0 %v278
    %399 = vmatprep.subr.mxu0 0.0
    %400 = vmatpush1.msra.mxu0 %v279
    %401 = vmatprep.subr.mxu0 0.0
    %402 = vmatpush1.msra.mxu0 %v280
    %403 = vmatprep.subr.mxu0 0.0
    %404 = vmatpush1.msra.mxu0 %v281
    %405 = vmatprep.subr.mxu0 0.0
    %406 = vmatpush1.msra.mxu0 %v282
    %407 = vmatprep.subr.mxu0 0.0
    %408 = vmatpush1.msra.mxu0 %v283
    %409 = vmatprep.subr.mxu0 0.0
    %410 = vmatpush1.msra.mxu0 %v284
    %411 = vmatprep.subr.mxu0 0.0
    %412 = vmatpush1.msra.mxu0 %v285
    %413 = vmatprep.subr.mxu0 0.0
    %414 = vmatpush1.msra.mxu0 %v286
    %415 = vmatprep.subr.mxu0 0.0
    %416 = vmatpush1.msra.mxu0 %v287
    %417 = vmatprep.subr.mxu0 0.0
    %418 = vmatpush1.msra.mxu0 %v288
    %419 = vmatprep.subr.mxu0 0.0
    %420 = vmatpush1.msra.mxu0 %v289
    %421 = vmatprep.mubr.f32.mxu0 %v346
    %422 = vmatmul.mubr.f32.gmra.mrb[0].mxu0 %v343
    %v423 = vpop.f32.mrb[0].mxu0
    %v424 = vadd.f32 0.0, %v423
    %v425 = vpop.f32.mrb[0].mxu0
    %426 = vdwg.mxu0
    %427 = vmatprep.subr.mxu0 0.0
    %428 = vmatpush1.msra.mxu0 %v290
    %429 = vmatprep.subr.mxu0 0.0
    %430 = vmatpush1.msra.mxu0 %v291
    %431 = vmatprep.subr.mxu0 0.0
    %432 = vmatpush1.msra.mxu0 %v292
    %433 = vmatprep.subr.mxu0 0.0
    %434 = vmatpush1.msra.mxu0 %v293
    %435 = vmatprep.subr.mxu0 0.0
    %436 = vmatpush1.msra.mxu0 %v294
    %437 = vmatprep.subr.mxu0 0.0
    %438 = vmatpush1.msra.mxu0 %v295
    %439 = vmatprep.subr.mxu0 0.0
    %440 = vmatpush1.msra.mxu0 %v296
    %441 = vmatprep.subr.mxu0 0.0
    %442 = vmatpush1.msra.mxu0 %v297
    %443 = vmatprep.subr.mxu0 0.0
    %444 = vmatpush1.msra.mxu0 %v298
    %445 = vmatprep.subr.mxu0 0.0
    %446 = vmatpush1.msra.mxu0 %v299
    %447 = vmatprep.subr.mxu0 0.0
    %448 = vmatpush1.msra.mxu0 %v300
    %449 = vmatprep.subr.mxu0 0.0
    %450 = vmatpush1.msra.mxu0 %v301
    %451 = vmatprep.subr.mxu0 0.0
    %452 = vmatpush1.msra.mxu0 %v302
    %453 = vmatprep.subr.mxu0 0.0
    %454 = vmatpush1.msra.mxu0 %v303
    %455 = vmatprep.subr.mxu0 0.0
    %456 = vmatpush1.msra.mxu0 %v304
    %457 = vmatprep.subr.mxu0 0.0
    %458 = vmatpush1.msra.mxu0 %v305
    %459 = vmatprep.subr.mxu0 0.0
    %460 = vmatpush1.msra.mxu0 %v306
    %461 = vmatprep.subr.mxu0 0.0
    %462 = vmatpush1.msra.mxu0 %v307
    %463 = vmatprep.subr.mxu0 0.0
    %464 = vmatpush1.msra.mxu0 %v308
    %465 = vmatprep.subr.mxu0 0.0
    %466 = vmatpush1.msra.mxu0 %v309
    %467 = vmatprep.subr.mxu0 0.0
    %468 = vmatpush1.msra.mxu0 %v310
    %469 = vmatprep.subr.mxu0 0.0
    %470 = vmatpush1.msra.mxu0 %v311
    %471 = vmatprep.subr.mxu0 0.0
    %472 = vmatpush1.msra.mxu0 %v312
    %473 = vmatprep.subr.mxu0 0.0
    %474 = vmatpush1.msra.mxu0 %v313
    %475 = vmatprep.subr.mxu0 0.0
    %476 = vmatpush1.msra.mxu0 %v314
    %477 = vmatprep.subr.mxu0 0.0
    %478 = vmatpush1.msra.mxu0 %v315
    %479 = vmatprep.subr.mxu0 0.0
    %480 = vmatpush1.msra.mxu0 %v316
    %481 = vmatprep.subr.mxu0 0.0
    %482 = vmatpush1.msra.mxu0 %v317
    %483 = vmatprep.subr.mxu0 0.0
    %484 = vmatpush1.msra.mxu0 %v318
    %485 = vmatprep.subr.mxu0 0.0
    %486 = vmatpush1.msra.mxu0 %v319
    %487 = vmatprep.subr.mxu0 0.0
    %488 = vmatpush1.msra.mxu0 %v320
    %489 = vmatprep.subr.mxu0 0.0
    %490 = vmatpush1.msra.mxu0 %v321
    %491 = vmatprep.mubr.f32.mxu0 %v352
    %492 = vmatmul.mubr.f32.gmra.mrb[0].mxu0 %v349
    %v493 = vpop.f32.mrb[0].mxu0
    %v494 = vadd.f32 %v424, %v493
    %v495 = vpop.f32.mrb[0].mxu0
    %496 = vdwg.mxu0
    %v513 = vsel %vm338, %v182, %v178
    %v514 = vsel %vm340, %v186, %v513
    %v515 = vsel %vm342, %v190, %v514
    %v516 = vsel %vm338, %v183, %v179
    %v517 = vsel %vm340, %v187, %v516
    %v518 = vsel %vm342, %v191, %v517
    %v519 = vsel %vm338, %v184, %v180
    %v520 = vsel %vm340, %v188, %v519
    %v521 = vsel %vm342, %v192, %v520
    %v522 = vsel %vm338, %v185, %v181
    %v523 = vsel %vm340, %v189, %v522
    %v524 = vsel %vm342, %v193, %v523
    %529 = vmatprep.subr.mxu0 0.0
    %530 = vmatpush1.msra.mxu0 %v194
    %531 = vmatprep.subr.mxu0 0.0
    %532 = vmatpush1.msra.mxu0 %v195
    %533 = vmatprep.subr.mxu0 0.0
    %534 = vmatpush1.msra.mxu0 %v196
    %535 = vmatprep.subr.mxu0 0.0
    %536 = vmatpush1.msra.mxu0 %v197
    %537 = vmatprep.subr.mxu0 0.0
    %538 = vmatpush1.msra.mxu0 %v198
    %539 = vmatprep.subr.mxu0 0.0
    %540 = vmatpush1.msra.mxu0 %v199
    %541 = vmatprep.subr.mxu0 0.0
    %542 = vmatpush1.msra.mxu0 %v200
    %543 = vmatprep.subr.mxu0 0.0
    %544 = vmatpush1.msra.mxu0 %v201
    %545 = vmatprep.subr.mxu0 0.0
    %546 = vmatpush1.msra.mxu0 %v202
    %547 = vmatprep.subr.mxu0 0.0
    %548 = vmatpush1.msra.mxu0 %v203
    %549 = vmatprep.subr.mxu0 0.0
    %550 = vmatpush1.msra.mxu0 %v204
    %551 = vmatprep.subr.mxu0 0.0
    %552 = vmatpush1.msra.mxu0 %v205
    %553 = vmatprep.subr.mxu0 0.0
    %554 = vmatpush1.msra.mxu0 %v206
    %555 = vmatprep.subr.mxu0 0.0
    %556 = vmatpush1.msra.mxu0 %v207
    %557 = vmatprep.subr.mxu0 0.0
    %558 = vmatpush1.msra.mxu0 %v208
    %559 = vmatprep.subr.mxu0 0.0
    %560 = vmatpush1.msra.mxu0 %v209
    %561 = vmatprep.subr.mxu0 0.0
    %562 = vmatpush1.msra.mxu0 %v210
    %563 = vmatprep.subr.mxu0 0.0
    %564 = vmatpush1.msra.mxu0 %v211
    %565 = vmatprep.subr.mxu0 0.0
    %566 = vmatpush1.msra.mxu0 %v212
    %567 = vmatprep.subr.mxu0 0.0
    %568 = vmatpush1.msra.mxu0 %v213
    %569 = vmatprep.subr.mxu0 0.0
    %570 = vmatpush1.msra.mxu0 %v214
    %571 = vmatprep.subr.mxu0 0.0
    %572 = vmatpush1.msra.mxu0 %v215
    %573 = vmatprep.subr.mxu0 0.0
    %574 = vmatpush1.msra.mxu0 %v216
    %575 = vmatprep.subr.mxu0 0.0
    %576 = vmatpush1.msra.mxu0 %v217
    %577 = vmatprep.subr.mxu0 0.0
    %578 = vmatpush1.msra.mxu0 %v218
    %579 = vmatprep.subr.mxu0 0.0
    %580 = vmatpush1.msra.mxu0 %v219
    %581 = vmatprep.subr.mxu0 0.0
    %582 = vmatpush1.msra.mxu0 %v220
    %583 = vmatprep.subr.mxu0 0.0
    %584 = vmatpush1.msra.mxu0 %v221
    %585 = vmatprep.subr.mxu0 0.0
    %586 = vmatpush1.msra.mxu0 %v222
    %587 = vmatprep.subr.mxu0 0.0
    %588 = vmatpush1.msra.mxu0 %v223
    %589 = vmatprep.subr.mxu0 0.0
    %590 = vmatpush1.msra.mxu0 %v224
    %591 = vmatprep.subr.mxu0 0.0
    %592 = vmatpush1.msra.mxu0 %v225
    %593 = vmatprep.mubr.f32.mxu0 %v518
    %594 = vmatmul.mubr.f32.gmra.mrb[0].mxu0 %v515
    %v595 = vpop.f32.mrb[0].mxu0
    %v596 = vadd.f32 %v494, %v595
    %v597 = vpop.f32.mrb[0].mxu0
    %598 = vdwg.mxu0
    %599 = vmatprep.subr.mxu0 0.0
    %600 = vmatpush1.msra.mxu0 %v226
    %601 = vmatprep.subr.mxu0 0.0
    %602 = vmatpush1.msra.mxu0 %v227
    %603 = vmatprep.subr.mxu0 0.0
    %604 = vmatpush1.msra.mxu0 %v228
    %605 = vmatprep.subr.mxu0 0.0
    %606 = vmatpush1.msra.mxu0 %v229
    %607 = vmatprep.subr.mxu0 0.0
    %608 = vmatpush1.msra.mxu0 %v230
    %609 = vmatprep.subr.mxu0 0.0
    %610 = vmatpush1.msra.mxu0 %v231
    %611 = vmatprep.subr.mxu0 0.0
    %612 = vmatpush1.msra.mxu0 %v232
    %613 = vmatprep.subr.mxu0 0.0
    %614 = vmatpush1.msra.mxu0 %v233
    %615 = vmatprep.subr.mxu0 0.0
    %616 = vmatpush1.msra.mxu0 %v234
    %617 = vmatprep.subr.mxu0 0.0
    %618 = vmatpush1.msra.mxu0 %v235
    %619 = vmatprep.subr.mxu0 0.0
    %620 = vmatpush1.msra.mxu0 %v236
    %621 = vmatprep.subr.mxu0 0.0
    %622 = vmatpush1.msra.mxu0 %v237
    %623 = vmatprep.subr.mxu0 0.0
    %624 = vmatpush1.msra.mxu0 %v238
    %625 = vmatprep.subr.mxu0 0.0
    %626 = vmatpush1.msra.mxu0 %v239
    %627 = vmatprep.subr.mxu0 0.0
    %628 = vmatpush1.msra.mxu0 %v240
    %629 = vmatprep.subr.mxu0 0.0
    %630 = vmatpush1.msra.mxu0 %v241
    %631 = vmatprep.subr.mxu0 0.0
    %632 = vmatpush1.msra.mxu0 %v242
    %633 = vmatprep.subr.mxu0 0.0
    %634 = vmatpush1.msra.mxu0 %v243
    %635 = vmatprep.subr.mxu0 0.0
    %636 = vmatpush1.msra.mxu0 %v244
    %637 = vmatprep.subr.mxu0 0.0
    %638 = vmatpush1.msra.mxu0 %v245
    %639 = vmatprep.subr.mxu0 0.0
    %640 = vmatpush1.msra.mxu0 %v246
    %641 = vmatprep.subr.mxu0 0.0
    %642 = vmatpush1.msra.mxu0 %v247
    %643 = vmatprep.subr.mxu0 0.0
    %644 = vmatpush1.msra.mxu0 %v248
    %645 = vmatprep.subr.mxu0 0.0
    %646 = vmatpush1.msra.mxu0 %v249
    %647 = vmatprep.subr.mxu0 0.0
    %648 = vmatpush1.msra.mxu0 %v250
    %649 = vmatprep.subr.mxu0 0.0
    %650 = vmatpush1.msra.mxu0 %v251
    %651 = vmatprep.subr.mxu0 0.0
    %652 = vmatpush1.msra.mxu0 %v252
    %653 = vmatprep.subr.mxu0 0.0
    %654 = vmatpush1.msra.mxu0 %v253
    %655 = vmatprep.subr.mxu0 0.0
    %656 = vmatpush1.msra.mxu0 %v254
    %657 = vmatprep.subr.mxu0 0.0
    %658 = vmatpush1.msra.mxu0 %v255
    %659 = vmatprep.subr.mxu0 0.0
    %660 = vmatpush1.msra.mxu0 %v256
    %661 = vmatprep.subr.mxu0 0.0
    %662 = vmatpush1.msra.mxu0 %v257
    %663 = vmatprep.mubr.f32.mxu0 %v524
    %664 = vmatmul.mubr.f32.gmra.mrb[0].mxu0 %v521
    %v665 = vpop.f32.mrb[0].mxu0
    %v666 = vadd.f32 %v596, %v665
    %v667 = vpop.f32.mrb[0].mxu0
    %668 = vdwg.mxu0
    %v669 = vld [vmem:[%s3] sm:$0x1]
    %v671 = vlaneseq
    %v672 = vshrl.u32 %v671, 7
    %v673 = vsub.s32 0, %v672
    %v674 = vrot.slane %v669, %v673
    %v676 = vadd.f32 %v666, %v674
    %677 = vst [vmem:[#allocation2] sm:$0xf] %v676
    // Predicated region
    $region18: #{resnet_gaussian_forward.1} parent=1 // pred_check
      _
    $region19: #{resnet_gaussian_forward.1} parent=1 // pred_check_branch
      %679 = sbr.rel (0) target = $region21
    $region20: #{resnet_gaussian_forward.1} parent=1 // pred_region
      %s681 = ssub.s32 64, 64
      %682 = vsyncadd [#allocation3], %s681
      %s684 = sshll.u32 [#allocation2], 4
      %s685 = int_to_ptr.vmem [resolvable:$true] %s684
      %687 = dma.vmem_to_hbm [thread:$0]  %s685, 64, %s4, [#allocation3]
    $region21: #{resnet_gaussian_forward.1} parent=1 // pred_fallthru
      _
    // Predicated region
    $region22: #{resnet_gaussian_forward.1} parent=1 // pred_check
      _
    $region23: #{resnet_gaussian_forward.1} parent=1 // pred_check_branch
      %689 = sbr.rel (0) target = $region25
    $region24: #{resnet_gaussian_forward.1} parent=1 // pred_region
      %690 = dma.done [#allocation3], 64
    $region25: #{resnet_gaussian_forward.1} parent=1 // pred_fallthru
      _
    %691 = vsyncpa [#allocation3], 1

</llo_original>
